<compile_context>
chip_gen: v5e
topology: v5e:2x2
jax: 0.10.0
libtpu: 0.0.40
codegen_flags: <defaults>
</compile_context>

<pallas_src>
import functools

import jax
import jax.numpy as jnp
from jax.experimental import pallas as pl
from jax.experimental.pallas import tpu as pltpu

SUBLANE = 8     # vreg sublane height (second-to-last dim, f32)


def _round_up(n, m):
    return ((n + m - 1) // m) * m


def smlp_kernel(x_ref, w1_ref, b1_ref, w2_ref, b2_ref, o_ref, *, mxu_dtype):
    # x is already staged in mxu_dtype by the wrapper -> no per-tile cast.
    h = jnp.dot(x_ref[...], w1_ref[...], preferred_element_type=jnp.float32)
    h = jnp.tanh(h + b1_ref[...])                 # bias + tanh in f32 (VPU/EUP)
    o = jnp.dot(h.astype(mxu_dtype), w2_ref[...],
                preferred_element_type=jnp.float32)
    o_ref[...] = (o + b2_ref[...]).astype(o_ref.dtype)


def smlp_forward(x, w1, b1, w2, b2, *, block_b=1024, mxu_dtype=jnp.bfloat16,
                 out_dtype=None):
    """y = tanh(x @ w1 + b1) @ w2 + b2.

    x: [B, in_dim]; w1: [in_dim, hid_dim]; b1: [1, hid_dim];
    w2: [hid_dim, out_dim]; b2: [1, out_dim]  ->  [B, out_dim]
    Weights are stored [in, out] (transposed vs PyTorch's [out, in]).
    """
    B, in_dim = x.shape
    hid_dim = w1.shape[1]
    out_dim = w2.shape[1]
    if out_dtype is None:
        out_dtype = x.dtype
    f32 = jnp.float32

    # --- stage operands at natural width in the MXU dtype (no lane padding) ---
    x_m = x.astype(mxu_dtype)
    w1_m = w1.astype(mxu_dtype)
    w2_m = w2.astype(mxu_dtype)
    b1_f = b1.astype(f32)
    b2_f = b2.astype(f32)

    # --- batch tile: multiple of 8 sublanes, large (DMA-bound kernel), and
    #     capped at ceil(B/2) so the grid has >= 2 steps (v7x megacore). ---
    tb = _round_up(max(1, min(block_b, B)), SUBLANE)
    if B > 2 * SUBLANE:
        tb = min(tb, _round_up(pl.cdiv(B, 2), SUBLANE))
    b_p = _round_up(B, tb)
    if b_p != B:
        # Row-only zero pad (cheap, mxu dtype); padded rows are sliced off.
        x_m = jnp.zeros((b_p, in_dim), mxu_dtype).at[:B].set(x_m)
    grid = (b_p // tb,)

    kernel = functools.partial(smlp_kernel, mxu_dtype=mxu_dtype)

    mxu_bytes = jnp.dtype(mxu_dtype).itemsize
    out_bytes = jnp.dtype(out_dtype).itemsize
    cost = pl.CostEstimate(
        flops=2 * b_p * (in_dim * hid_dim + hid_dim * out_dim),
        transcendentals=b_p * hid_dim,
        bytes_accessed=(b_p * in_dim * mxu_bytes            # x
                        + b_p * out_dim * out_bytes          # out
                        + (in_dim * hid_dim + hid_dim * out_dim) * mxu_bytes
                        + (hid_dim + out_dim) * 4),          # weights + biases
    )

    out = pl.pallas_call(
        kernel,
        out_shape=jax.ShapeDtypeStruct((b_p, out_dim), out_dtype),
        grid_spec=pltpu.PrefetchScalarGridSpec(
            num_scalar_prefetch=0,
            grid=grid,
            in_specs=[
                pl.BlockSpec((tb, in_dim), lambda i: (i, 0)),       # x: batch-tiled
                pl.BlockSpec((in_dim, hid_dim), lambda i: (0, 0)),  # w1: resident
                pl.BlockSpec((1, hid_dim), lambda i: (0, 0)),       # b1: resident
                pl.BlockSpec((hid_dim, out_dim), lambda i: (0, 0)), # w2: resident
                pl.BlockSpec((1, out_dim), lambda i: (0, 0)),       # b2: resident
            ],
            out_specs=pl.BlockSpec((tb, out_dim), lambda i: (i, 0)),
        ),
        compiler_params=pltpu.CompilerParams(
            dimension_semantics=("parallel",),   # batch axis -> megacore split
            vmem_limit_bytes=32 * 1024 * 1024,   # working set < 1 MiB; ample headroom
        ),
        cost_estimate=cost,
    )(x_m, w1_m, b1_f, w2_m, b2_f)

    if b_p != B:
        out = out[:B]
    return out.astype(out_dtype)


def init_params(key, in_dim, out_dim, dtype=jnp.float32):
    """Deterministic init mimicking nn.Linear's U(-1/sqrt(fan_in), 1/sqrt(fan_in))."""
    k1, k2, k3, k4 = jax.random.split(key, 4)
    bound1 = 1.0 / jnp.sqrt(in_dim)
    # stored as [in, out] (transposed vs PyTorch's [out, in])
    w1 = jax.random.uniform(k1, (in_dim, in_dim), dtype, -bound1, bound1)
    b1 = jax.random.uniform(k2, (1, in_dim), dtype, -bound1, bound1)
    bound2 = 1.0 / jnp.sqrt(in_dim)
    w2 = jax.random.uniform(k3, (in_dim, out_dim), dtype, -bound2, bound2)
    b2 = jax.random.uniform(k4, (1, out_dim), dtype, -bound2, bound2)
    return w1, b1, w2, b2


if __name__ == "__main__":
    key = jax.random.PRNGKey(0)
    kx, kp = jax.random.split(key)

    in_dim, out_dim = 32, 16
    w1, b1, w2, b2 = init_params(kp, in_dim, out_dim)

    # Batch sizes: aligned (8) and ragged (200) to exercise the batch tiling,
    # megacore split (grid of 2) and the row-pad / slice path.
    for batch in (8, 200):
        x = jax.random.normal(jax.random.fold_in(kx, batch),
                              (batch, in_dim), jnp.float32)
        ref = jnp.tanh(x @ w1 + b1) @ w2 + b2   # plain-JAX PyTorch-equivalent

        # f32 MXU path: tight parity with the f32 reference.
        out_f32 = jax.block_until_ready(
            smlp_forward(x, w1, b1, w2, b2, mxu_dtype=jnp.float32))
        assert out_f32.shape == (batch, out_dim)
        assert jnp.allclose(out_f32, ref, atol=1e-5, rtol=1e-5)

        # bf16 MXU-operand path (default; fast on all generations): loosened
        # tolerance since operand rounding drifts from the f32 reference.
        out_bf16 = jax.block_until_ready(
            smlp_forward(x, w1, b1, w2, b2, mxu_dtype=jnp.bfloat16))
        assert out_bf16.shape == (batch, out_dim)
        assert jnp.allclose(out_bf16, ref, atol=2e-2, rtol=2e-2)

    print("KERNEL_OK")
</pallas_src>

<mosaic_0001>
module attributes {stable_mosaic.version = 11 : i64} {
  func.func @smlp_kernel(%arg0: i32, %arg1: memref<8x32xf32, #tpu.memory_space<vmem>>, %arg2: memref<32x32xf32, #tpu.memory_space<vmem>>, %arg3: memref<1x32xf32, #tpu.memory_space<vmem>>, %arg4: memref<32x16xf32, #tpu.memory_space<vmem>>, %arg5: memref<1x16xf32, #tpu.memory_space<vmem>>, %arg6: memref<8x16xf32, #tpu.memory_space<vmem>>) attributes {dimension_semantics = [#tpu.dimension_semantics<parallel>], iteration_bounds = array<i64: 1>, scalar_prefetch = 0 : i64, scratch_operands = 0 : i64, tpu.core_type = #tpu.core_type<tc>, window_params = [{transform_indices = @transform_0, window_bounds = array<i64: 8, 32>}, {pipeline_mode = #tpu.pipeline_mode<synchronous>, transform_indices = @transform_1, window_bounds = array<i64: 32, 32>}, {pipeline_mode = #tpu.pipeline_mode<synchronous>, transform_indices = @transform_2, window_bounds = array<i64: 1, 32>}, {pipeline_mode = #tpu.pipeline_mode<synchronous>, transform_indices = @transform_3, window_bounds = array<i64: 32, 16>}, {pipeline_mode = #tpu.pipeline_mode<synchronous>, transform_indices = @transform_4, window_bounds = array<i64: 1, 16>}, {transform_indices = @transform_5, window_bounds = array<i64: 8, 16>}]} {
    %c0 = arith.constant 0 : index
    %c0_0 = arith.constant 0 : index
    %0 = vector.load %arg1[%c0, %c0_0] : memref<8x32xf32, #tpu.memory_space<vmem>>, vector<8x32xf32>
    %c0_1 = arith.constant 0 : index
    %c0_2 = arith.constant 0 : index
    %1 = vector.load %arg2[%c0_1, %c0_2] : memref<32x32xf32, #tpu.memory_space<vmem>>, vector<32x32xf32>
    %cst = arith.constant dense<0.000000e+00> : vector<8x32xf32>
    %2 = tpu.matmul %0, %1, %cst {dimension_numbers = #tpu.dot_dimension_numbers<[1], [0], [0], [1], [0, 0, 1, 1], [], []>} : vector<8x32xf32>, vector<32x32xf32>, vector<8x32xf32> -> vector<8x32xf32>
    %c0_3 = arith.constant 0 : index
    %c0_4 = arith.constant 0 : index
    %3 = vector.load %arg3[%c0_3, %c0_4] : memref<1x32xf32, #tpu.memory_space<vmem>>, vector<1x32xf32>
    %4 = vector.broadcast %3 : vector<1x32xf32> to vector<8x32xf32>
    %5 = arith.addf %2, %4 : vector<8x32xf32>
    %6 = math.tanh %5 : vector<8x32xf32>
    %c0_5 = arith.constant 0 : index
    %c0_6 = arith.constant 0 : index
    %7 = vector.load %arg4[%c0_5, %c0_6] : memref<32x16xf32, #tpu.memory_space<vmem>>, vector<32x16xf32>
    %cst_7 = arith.constant dense<0.000000e+00> : vector<8x16xf32>
    %8 = tpu.matmul %6, %7, %cst_7 {dimension_numbers = #tpu.dot_dimension_numbers<[1], [0], [0], [1], [0, 0, 1, 1], [], []>} : vector<8x32xf32>, vector<32x16xf32>, vector<8x16xf32> -> vector<8x16xf32>
    %c0_8 = arith.constant 0 : index
    %c0_9 = arith.constant 0 : index
    %9 = vector.load %arg5[%c0_8, %c0_9] : memref<1x16xf32, #tpu.memory_space<vmem>>, vector<1x16xf32>
    %10 = vector.broadcast %9 : vector<1x16xf32> to vector<8x16xf32>
    %11 = arith.addf %8, %10 : vector<8x16xf32>
    %c0_10 = arith.constant 0 : index
    %c0_11 = arith.constant 0 : index
    %12 = vector.load %arg6[%c0_10, %c0_11] : memref<8x16xf32, #tpu.memory_space<vmem>>, vector<8x16xf32>
    tpu.vector_store %arg6[%c0_10, %c0_11], %11 {strides = array<i32>} : memref<8x16xf32, #tpu.memory_space<vmem>>, vector<8x16xf32>,
    return
  }
  func.func @transform_0(%arg0: i32) -> (i32, i32) {
    %c0_i32 = arith.constant 0 : i32
    %c0_i32_0 = arith.constant 0 : i32
    return %arg0, %c0_i32 : i32, i32
  }
  func.func @transform_1(%arg0: i32) -> (i32, i32) {
    %c0_i32 = arith.constant 0 : i32
    %c0_i32_0 = arith.constant 0 : i32
    %c0_i32_1 = arith.constant 0 : i32
    return %c0_i32, %c0_i32_0 : i32, i32
  }
  func.func @transform_2(%arg0: i32) -> (i32, i32) {
    %c0_i32 = arith.constant 0 : i32
    %c0_i32_0 = arith.constant 0 : i32
    %c0_i32_1 = arith.constant 0 : i32
    return %c0_i32, %c0_i32_0 : i32, i32
  }
  func.func @transform_3(%arg0: i32) -> (i32, i32) {
    %c0_i32 = arith.constant 0 : i32
    %c0_i32_0 = arith.constant 0 : i32
    %c0_i32_1 = arith.constant 0 : i32
    return %c0_i32, %c0_i32_0 : i32, i32
  }
  func.func @transform_4(%arg0: i32) -> (i32, i32) {
    %c0_i32 = arith.constant 0 : i32
    %c0_i32_0 = arith.constant 0 : i32
    %c0_i32_1 = arith.constant 0 : i32
    return %c0_i32, %c0_i32_0 : i32, i32
  }
  func.func @transform_5(%arg0: i32) -> (i32, i32) {
    %c0_i32 = arith.constant 0 : i32
    %c0_i32_0 = arith.constant 0 : i32
    return %arg0, %c0_i32 : i32, i32
  }
}

</mosaic_0001>

<llo_original>
// kernel: tpu_custom_call.1
$region0: #{tpu_custom_call.1}
  #allocation0 [shape = 'u32[]', space=smem, size = 0x4, offset = 0x4, fixed_abs, tag = 'smem constant byte address 0x4 - core index']
  #allocation1 [shape = 'u32[72,128]{1,0:T(1,128)}', space=vmem, size = 0x9000, scoped, tag = 'internal scratch']
  %s0 = inlined_call_operand.vmem [shape: f32[8,32], index: 0, kind: input, shape index: {}]
  %s1 = inlined_call_operand.vmem [shape: f32[32,32], index: 1, kind: input, shape index: {}]
  %s2 = inlined_call_operand.vmem [shape: f32[1,32], index: 2, kind: input, shape index: {}]
  %s3 = inlined_call_operand.vmem [shape: f32[32,16], index: 3, kind: input, shape index: {}]
  %s4 = inlined_call_operand.vmem [shape: f32[1,16], index: 4, kind: input, shape index: {}]
  %s5 = inlined_call_operand.hbm [shape: f32[8,16], index: 5, kind: output, shape index: {}]
  %s6 = sld [smem:[#allocation0]]
  $region30: #{tpu_custom_call.1} parent=0
    _
  %s8 = ssub.s32 1, %s6
  %s9 = scalar_select 0, %s8, %s6
  $region1: #{tpu_custom_call.1} parent=0
    #allocation2 [shape = 'u8[4096]{0}', space=vmem, size = 0x1000, scoped, tag = 'output window, operand 0, single buffered']
    #allocation3 [shape = 's32[1]{0}', space=sflag, size = 0x4, scoped, tag = 'scoped memory for tpu_custom_call.1']
    %10 = vsyncpa [#allocation3], 0
    // Predicated region
    $region2: #{tpu_custom_call.1} parent=1 // pred_check
      _
    $region3: #{tpu_custom_call.1} parent=1 // pred_check_branch
      %12 = sbr.rel (0) target = $region5
    $region4: #{tpu_custom_call.1} parent=1 // pred_region
      _
    $region5: #{tpu_custom_call.1} parent=1 // pred_fallthru
      _
    // Predicated region
    $region6: #{tpu_custom_call.1} parent=1 // pred_check
      _
    $region7: #{tpu_custom_call.1} parent=1 // pred_check_branch
      %14 = sbr.rel (0) target = $region9
    $region8: #{tpu_custom_call.1} parent=1 // pred_region
      _
    $region9: #{tpu_custom_call.1} parent=1 // pred_fallthru
      _
    // Predicated region
    $region10: #{tpu_custom_call.1} parent=1 // pred_check
      _
    $region11: #{tpu_custom_call.1} parent=1 // pred_check_branch
      %16 = sbr.rel (0) target = $region13
    $region12: #{tpu_custom_call.1} parent=1 // pred_region
      _
    $region13: #{tpu_custom_call.1} parent=1 // pred_fallthru
      _
    // Predicated region
    $region14: #{tpu_custom_call.1} parent=1 // pred_check
      _
    $region15: #{tpu_custom_call.1} parent=1 // pred_check_branch
      %18 = sbr.rel (0) target = $region17
    $region16: #{tpu_custom_call.1} parent=1 // pred_region
      _
    $region17: #{tpu_custom_call.1} parent=1 // pred_fallthru
      _
    // Predicated region
    $region18: #{tpu_custom_call.1} parent=1 // pred_check
      _
    $region19: #{tpu_custom_call.1} parent=1 // pred_check_branch
      %20 = sbr.rel (0) target = $region21
    $region20: #{tpu_custom_call.1} parent=1 // pred_region
      _
    $region21: #{tpu_custom_call.1} parent=1 // pred_fallthru
      _
    %v21 = vld [vmem:[%s0] sm:$0xff]
    %v22 = vld [vmem:[%s1] sm:$0xff]
    %v23 = vld [vmem:[%s1 + $0x8] sm:$0xff]
    %v24 = vld [vmem:[%s1 + $0x10] sm:$0xff]
    %v25 = vld [vmem:[%s1 + $0x18] sm:$0xff]
    %v26 = vld [vmem:[%s2] sm:$0x1]
    %v28 = vperm.slane %v26, 0
    %vm30 = vcmask 261120
    %v32 = vsel %vm30, %v21, 0
    %34 = vmatpush.msra.mxu0 0.0
    %35 = vmatpush.msra.mxu0 0.0
    %36 = vmatpush.msra.mxu0 0.0
    %37 = vmatpush.msra.mxu0 0.0
    %38 = vmatpush.msra.mxu0 0.0
    %39 = vmatpush.msra.mxu0 0.0
    %40 = vmatpush.msra.mxu0 0.0
    %41 = vmatpush.msra.mxu0 0.0
    %42 = vmatpush.msra.mxu0 0.0
    %43 = vmatpush.msra.mxu0 0.0
    %44 = vmatpush.msra.mxu0 0.0
    %45 = vmatpush.msra.mxu0 0.0
    %46 = vmatpush.msra.mxu0 %v25
    %47 = vmatpush.msra.mxu0 %v24
    %48 = vmatpush.msra.mxu0 %v23
    %49 = vmatpush.msra.mxu0 %v22
    %50 = vmatmul.f32.gmra.mxu0 %v32
    %v51 = vpop.f32.mrf.mxu0
    %v52 = vadd.f32 %v28, %v51
    %53 = vdwg.mxu0
    %v54 = vtanh.pop %v52
    %v55 = vld [vmem:[%s3] sm:$0xff]
    %v56 = vld [vmem:[%s3 + $0x8] sm:$0xff]
    %v57 = vld [vmem:[%s3 + $0x10] sm:$0xff]
    %v58 = vld [vmem:[%s3 + $0x18] sm:$0xff]
    %v59 = vld [vmem:[%s4] sm:$0x1]
    %v61 = vperm.slane %v59, 0
    %v64 = vsel %vm30, %v54, 0
    %66 = vmatpush.msra.mxu0 0.0
    %67 = vmatpush.msra.mxu0 0.0
    %68 = vmatpush.msra.mxu0 0.0
    %69 = vmatpush.msra.mxu0 0.0
    %70 = vmatpush.msra.mxu0 0.0
    %71 = vmatpush.msra.mxu0 0.0
    %72 = vmatpush.msra.mxu0 0.0
    %73 = vmatpush.msra.mxu0 0.0
    %74 = vmatpush.msra.mxu0 0.0
    %75 = vmatpush.msra.mxu0 0.0
    %76 = vmatpush.msra.mxu0 0.0
    %77 = vmatpush.msra.mxu0 0.0
    %78 = vmatpush.msra.mxu0 %v58
    %79 = vmatpush.msra.mxu0 %v57
    %80 = vmatpush.msra.mxu0 %v56
    %81 = vmatpush.msra.mxu0 %v55
    %82 = vmatmul.f32.gmra.mxu0 %v64
    %v83 = vpop.f32.mrf.mxu0
    %v84 = vadd.f32 %v61, %v83
    %85 = vdwg.mxu0
    %vm86 = vcmask 130048
    %87 = vst.msk [vmem:[#allocation2] sm:$0xff] %vm86, %v84
    // Predicated region
    $region22: #{tpu_custom_call.1} parent=1 // pred_check
      _
    $region23: #{tpu_custom_call.1} parent=1 // pred_check_branch
      %89 = sbr.rel (0) target = $region25
    $region24: #{tpu_custom_call.1} parent=1 // pred_region
      %91 = vsyncadd [#allocation3], 0
      %s93 = sshll.u32 [#allocation2], 4
      %s94 = int_to_ptr.vmem [resolvable:$true] %s93
      %s95 = sshll.u32 %s5, 4
      %s96 = int_to_ptr.hbm [resolvable:$true] %s95
      %98 = dma.vmem_to_hbm [thread:$0]  %s94, 128, %s96, [#allocation3]
    $region25: #{tpu_custom_call.1} parent=1 // pred_fallthru
      _
    // Predicated region
    $region26: #{tpu_custom_call.1} parent=1 // pred_check
      _
    $region27: #{tpu_custom_call.1} parent=1 // pred_check_branch
      %100 = sbr.rel (0) target = $region29
    $region28: #{tpu_custom_call.1} parent=1 // pred_region
      %102 = dma.done [#allocation3], 128
    $region29: #{tpu_custom_call.1} parent=1 // pred_fallthru
      _
    %103 = vsyncpa [#allocation3], 1

</llo_original>
